<compile_context>
chip_gen: v5e
topology: v5e:2x2
jax: 0.10.0
libtpu: 0.0.40
codegen_flags: <defaults>
</compile_context>

<pallas_src>
import functools

import numpy as np
import jax
import jax.numpy as jnp
from jax import lax
from jax.experimental import pallas as pl
from jax.experimental.pallas import tpu as pltpu


# ----------------------------------------------------------------------------
# Pallas kernel
# ----------------------------------------------------------------------------
def strip_pooling_kernel(
    x_ref, w1x1_ref, ball_ref, w33_ref, w1d_ref, w3s_ref, b3_ref, mask_ref,
    poolT1_ref, S1_ref, upT1_ref,
    poolT2_ref, S2_ref, upT2_ref,
    poolT3_ref, S3_ref, upT3_ref,
    poolT4_ref, S4_ref, upT4_ref,
    o_ref, *, W, HW, roll_like_jnp):
  dot = functools.partial(jnp.dot, preferred_element_type=jnp.float32)
  x = x_ref[0]                                                  # (Cin, HW)

  # conv1_1 / conv1_2 : 1x1 conv + folded BN, then ReLU
  a1 = jnp.maximum(dot(w1x1_ref[0], x) + ball_ref[0], 0.0)      # (Ci, HW)
  a2 = jnp.maximum(dot(w1x1_ref[1], x) + ball_ref[1], 0.0)      # (Ci, HW)

  def conv3x3_full(v, widx, bias):
    """Full-resolution 3x3 conv (+ folded BN bias) on a (Ci, H*W) flat map."""
    acc = dot(w33_ref[widx * 9 + 4], v)           # centre tap: no roll, no mask
    for ky in range(3):
      for kx in range(3):
        t = ky * 3 + kx
        if t == 4:
          continue
        s = (ky - 1) * W + (kx - 1)                             # flat source offset
        amt = ((-s) if roll_like_jnp else s) % HW
        shifted = pltpu.roll(v, amt, axis=1) * mask_ref[t]      # zero-pad via mask
        acc = acc + dot(w33_ref[widx * 9 + t], shifted)
    return acc + bias

  def pooled_branch(v, poolT_ref, S_ref, upT_ref, n_taps, center, tap_w, bias):
    """adaptive-pool -> small conv (+BN) -> bilinear upsample, all as matmuls."""
    pooled = dot(v, poolT_ref[...])                             # (Ci, P)
    acc = dot(tap_w(center), pooled)              # centre tap: shift matrix is identity
    for t in range(n_taps):
      if t == center:
        continue
      shifted = dot(pooled, S_ref[t])                           # zero-padded spatial shift
      acc = acc + dot(tap_w(t), shifted)
    return dot(acc + bias, upT_ref[...])                        # (Ci, HW)

  c0 = conv3x3_full(a1, 0, ball_ref[2])                                     # conv2_0
  u1 = pooled_branch(a1, poolT1_ref, S1_ref, upT1_ref, 9, 4,
                     lambda t: w33_ref[1 * 9 + t], ball_ref[3])             # x2_2
  u2 = pooled_branch(a1, poolT2_ref, S2_ref, upT2_ref, 9, 4,
                     lambda t: w33_ref[2 * 9 + t], ball_ref[4])             # x2_3
  u3 = pooled_branch(a2, poolT3_ref, S3_ref, upT3_ref, 3, 1,
                     lambda t: w1d_ref[0 * 3 + t], ball_ref[5])             # x2_4
  u4 = pooled_branch(a2, poolT4_ref, S4_ref, upT4_ref, 3, 1,
                     lambda t: w1d_ref[1 * 3 + t], ball_ref[6])             # x2_5

  y1 = jnp.maximum(c0 + u1 + u2, 0.0)
  y1 = jnp.maximum(conv3x3_full(y1, 3, ball_ref[7]), 0.0)                   # conv2_5
  y2 = jnp.maximum(u4 + u3, 0.0)
  y2 = jnp.maximum(conv3x3_full(y2, 4, ball_ref[8]), 0.0)                   # conv2_6

  out = dot(w3s_ref[0], y1) + dot(w3s_ref[1], y2) + b3_ref[...]             # conv3
  o_ref[0] = jnp.maximum(x + out, 0.0).astype(o_ref.dtype)


# ----------------------------------------------------------------------------
# Roll-convention probe (pltpu.roll is documented to follow jnp.roll; verify once,
# eagerly, so the main wrapper stays jit-compatible).
# ----------------------------------------------------------------------------
_ROLL_MATCHES_JNP = None


def _roll_matches_jnp():
  global _ROLL_MATCHES_JNP
  if _ROLL_MATCHES_JNP is None:
    base = jnp.broadcast_to(jnp.arange(128, dtype=jnp.float32)[None, :], (8, 128))

    def k(x_ref, o_ref):
      o_ref[...] = pltpu.roll(x_ref[...], 1, axis=1)

    rolled = pl.pallas_call(
        k, out_shape=jax.ShapeDtypeStruct((8, 128), jnp.float32))(base)
    _ROLL_MATCHES_JNP = bool(rolled[0, 0] == 127.0)
  return _ROLL_MATCHES_JNP


# ----------------------------------------------------------------------------
# Wrapper (jit-compatible as long as _roll_matches_jnp() is resolved beforehand)
# ----------------------------------------------------------------------------
def strip_pooling_forward(x_nchw, folded, consts):
  """x_nchw: (B, Cin, H, W) float32 -> (B, Cin, H, W)."""
  B, Cin, H, W = x_nchw.shape
  HW = H * W
  x_flat = x_nchw.reshape(B, Cin, HW)               # reshape only, no transpose

  const_operands = [
      folded['w1x1'], folded['ball'], folded['w33'], folded['w1d'],
      folded['w3s'], folded['b3'], consts['masks'],
      consts['poolT1'], consts['S1'], consts['upT1'],
      consts['poolT2'], consts['S2'], consts['upT2'],
      consts['poolT3'], consts['S3'], consts['upT3'],
      consts['poolT4'], consts['S4'], consts['upT4'],
  ]

  def const_spec(arr):
    shape = tuple(arr.shape)
    # Constant block index across the grid -> stays resident in VMEM (no re-DMA).
    return pl.BlockSpec(shape, lambda b: (0,) * len(shape))

  in_specs = ([pl.BlockSpec((1, Cin, HW), lambda b: (b, 0, 0))] +
              [const_spec(a) for a in const_operands])
  out_spec = pl.BlockSpec((1, Cin, HW), lambda b: (b, 0, 0))

  y = pl.pallas_call(
      functools.partial(strip_pooling_kernel, W=W, HW=HW,
                        roll_like_jnp=_roll_matches_jnp()),
      out_shape=jax.ShapeDtypeStruct((B, Cin, HW), jnp.float32),
      grid=(B,),
      in_specs=in_specs,
      out_specs=out_spec,
      compiler_params=pltpu.CompilerParams(dimension_semantics=("parallel",)),
  )(x_flat, *const_operands)
  return y.reshape(B, Cin, H, W)


# ----------------------------------------------------------------------------
# Shape-only constant matrices (pooling / shifts / bilinear upsample / pad masks)
# ----------------------------------------------------------------------------
def _adaptive_pool_matrix(in_size, out_size):
  m = np.zeros((out_size, in_size), np.float64)
  for i in range(out_size):
    s = (i * in_size) // out_size
    e = ((i + 1) * in_size + out_size - 1) // out_size          # ceil
    m[i, s:e] = 1.0 / (e - s)
  return m


def _bilinear_upsample_matrix(in_size, out_size):
  # F.interpolate(mode='bilinear', align_corners=True), one axis.
  m = np.zeros((out_size, in_size), np.float64)
  if in_size == 1:
    m[:, 0] = 1.0
    return m
  for o in range(out_size):
    src = 0.0 if out_size == 1 else o * (in_size - 1) / (out_size - 1)
    i0 = min(int(np.floor(src)), in_size - 2)
    frac = src - i0
    m[o, i0] += 1.0 - frac
    m[o, i0 + 1] += frac
  return m


def _shift_matrices(ph, pw, taps):
  # S[t] such that (flat @ S[t])[i*pw+j] = flat[(i+dy)*pw + (j+dx)], zero outside.
  n = ph * pw
  out = np.zeros((len(taps), n, n), np.float64)
  for t, (dy, dx) in enumerate(taps):
    for i in range(ph):
      for j in range(pw):
        ii, jj = i + dy, j + dx
        if 0 <= ii < ph and 0 <= jj < pw:
          out[t, ii * pw + jj, i * pw + j] = 1.0
  return out


def _tap_masks(H, W):
  m = np.zeros((9, 1, H * W), np.float64)
  for ky in range(3):
    for kx in range(3):
      dy, dx = ky - 1, kx - 1
      for h in range(H):
        for w in range(W):
          if 0 <= h + dy < H and 0 <= w + dx < W:
            m[ky * 3 + kx, 0, h * W + w] = 1.0
  return m


def make_constants(H, W, pool_size):
  taps9 = [(ky - 1, kx - 1) for ky in range(3) for kx in range(3)]

  def square(p):
    poolT = np.kron(_adaptive_pool_matrix(H, p), _adaptive_pool_matrix(W, p)).T
    upT = np.kron(_bilinear_upsample_matrix(p, H), _bilinear_upsample_matrix(p, W)).T
    return poolT, _shift_matrices(p, p, taps9), upT

  poolT1, S1, upT1 = square(pool_size[0])
  poolT2, S2, upT2 = square(pool_size[1])

  poolT3 = np.kron(_adaptive_pool_matrix(H, 1), _adaptive_pool_matrix(W, W)).T   # (HW, W)
  S3 = _shift_matrices(1, W, [(0, d) for d in (-1, 0, 1)])
  upT3 = np.kron(_bilinear_upsample_matrix(1, H), _bilinear_upsample_matrix(W, W)).T  # (W, HW)

  poolT4 = np.kron(_adaptive_pool_matrix(H, H), _adaptive_pool_matrix(W, 1)).T   # (HW, H)
  S4 = _shift_matrices(H, 1, [(d, 0) for d in (-1, 0, 1)])
  upT4 = np.kron(_bilinear_upsample_matrix(H, H), _bilinear_upsample_matrix(1, W)).T  # (H, HW)

  c = dict(masks=_tap_masks(H, W),
           poolT1=poolT1, S1=S1, upT1=upT1,
           poolT2=poolT2, S2=S2, upT2=upT2,
           poolT3=poolT3, S3=S3, upT3=upT3,
           poolT4=poolT4, S4=S4, upT4=upT4)
  return {k: jnp.asarray(v, jnp.float32) for k, v in c.items()}


# ----------------------------------------------------------------------------
# Parameters (raw conv weights + inference-mode BN), plus folding for the kernel
# ----------------------------------------------------------------------------
def make_params(key, in_channels):
  Ci = in_channels // 4
  keys = jax.random.split(key, 20)
  it = iter(keys)

  def conv_w(cout, cin, kh, kw):
    k = next(it)
    fan = cin * kh * kw
    return jax.random.normal(k, (cout, cin, kh, kw), jnp.float32) / np.sqrt(fan)

  def bn(ch):
    k1, k2, k3, k4 = jax.random.split(next(it), 4)
    return dict(gamma=1.0 + 0.1 * jax.random.normal(k1, (ch,), jnp.float32),
                beta=0.1 * jax.random.normal(k2, (ch,), jnp.float32),
                mean=0.1 * jax.random.normal(k3, (ch,), jnp.float32),
                var=0.5 + jax.random.uniform(k4, (ch,), jnp.float32),
                eps=1e-5)

  p = {}
  p['w11'], p['bn11'] = conv_w(Ci, in_channels, 1, 1), bn(Ci)
  p['w12'], p['bn12'] = conv_w(Ci, in_channels, 1, 1), bn(Ci)
  p['w20'], p['bn20'] = conv_w(Ci, Ci, 3, 3), bn(Ci)
  p['w21'], p['bn21'] = conv_w(Ci, Ci, 3, 3), bn(Ci)
  p['w22'], p['bn22'] = conv_w(Ci, Ci, 3, 3), bn(Ci)
  p['w23'], p['bn23'] = conv_w(Ci, Ci, 1, 3), bn(Ci)
  p['w24'], p['bn24'] = conv_w(Ci, Ci, 3, 1), bn(Ci)
  p['w25'], p['bn25'] = conv_w(Ci, Ci, 3, 3), bn(Ci)
  p['w26'], p['bn26'] = conv_w(Ci, Ci, 3, 3), bn(Ci)
  p['w3'], p['bn3'] = conv_w(in_channels, 2 * Ci, 1, 1), bn(in_channels)
  return p


def fold_params(p):
  Ci, Cin = p['w11'].shape[0], p['w11'].shape[1]

  def fold(w, bn):
    scale = bn['gamma'] / jnp.sqrt(bn['var'] + bn['eps'])
    return w * scale[:, None, None, None], bn['beta'] - bn['mean'] * scale

  w11, b11 = fold(p['w11'], p['bn11'])
  w12, b12 = fold(p['w12'], p['bn12'])
  w20, b20 = fold(p['w20'], p['bn20'])
  w21, b21 = fold(p['w21'], p['bn21'])
  w22, b22 = fold(p['w22'], p['bn22'])
  w23, b23 = fold(p['w23'], p['bn23'])
  w24, b24 = fold(p['w24'], p['bn24'])
  w25, b25 = fold(p['w25'], p['bn25'])
  w26, b26 = fold(p['w26'], p['bn26'])
  w3, b3 = fold(p['w3'], p['bn3'])

  taps9 = lambda w: jnp.stack([w[:, :, ky, kx] for ky in range(3) for kx in range(3)])
  return dict(
      w1x1=jnp.stack([w11[:, :, 0, 0], w12[:, :, 0, 0]]),                       # (2,Ci,Cin)
      ball=jnp.stack([b11, b12, b20, b21, b22, b23, b24, b25, b26])[:, :, None],  # (9,Ci,1)
      w33=jnp.concatenate([taps9(w20), taps9(w21), taps9(w22),
                           taps9(w25), taps9(w26)], axis=0),                    # (45,Ci,Ci)
      w1d=jnp.concatenate([jnp.stack([w23[:, :, 0, kx] for kx in range(3)]),
                           jnp.stack([w24[:, :, ky, 0] for ky in range(3)])],
                          axis=0),                                              # (6,Ci,Ci)
      w3s=jnp.stack([w3[:, :Ci, 0, 0], w3[:, Ci:, 0, 0]]),                      # (2,Cin,Ci)
      b3=b3[:, None],                                                           # (Cin,1)
  )


# ----------------------------------------------------------------------------
# Pure-JAX reference (independent code path: lax convs, explicit pooling/interp)
# ----------------------------------------------------------------------------
def _adaptive_avg_pool_ref(x, oh, ow):
  B, C, H, W = x.shape
  rows = []
  for i in range(oh):
    hs, he = (i * H) // oh, ((i + 1) * H + oh - 1) // oh
    cols = []
    for j in range(ow):
      ws, we = (j * W) // ow, ((j + 1) * W + ow - 1) // ow
      cols.append(jnp.mean(x[:, :, hs:he, ws:we], axis=(2, 3)))
    rows.append(jnp.stack(cols, axis=-1))
  return jnp.stack(rows, axis=-2)


def _interp_axis_ref(x, out_size, axis):
  in_size = x.shape[axis]
  if in_size == out_size:
    return x
  if in_size == 1:
    return jnp.repeat(x, out_size, axis=axis)
  pos = jnp.arange(out_size, dtype=jnp.float32) * ((in_size - 1) / (out_size - 1))
  i0 = jnp.clip(jnp.floor(pos).astype(jnp.int32), 0, in_size - 2)
  frac = pos - i0.astype(jnp.float32)
  x0 = jnp.take(x, i0, axis=axis)
  x1 = jnp.take(x, i0 + 1, axis=axis)
  bshape = [1] * x.ndim
  bshape[axis] = out_size
  frac = frac.reshape(bshape)
  return x0 * (1.0 - frac) + x1 * frac


def _upsample_bilinear_ref(x, H, W):          # align_corners=True
  return _interp_axis_ref(_interp_axis_ref(x, H, 2), W, 3)


def _conv_bn_ref(x, w, bn, pad, relu=False):
  y = lax.conv_general_dilated(x, w, (1, 1), pad,
                               dimension_numbers=('NCHW', 'OIHW', 'NCHW'),
                               precision=lax.Precision.HIGHEST)
  scale = bn['gamma'] / jnp.sqrt(bn['var'] + bn['eps'])
  y = ((y - bn['mean'][None, :, None, None]) * scale[None, :, None, None]
       + bn['beta'][None, :, None, None])
  return jnp.maximum(y, 0.0) if relu else y


def strip_pooling_reference(x, p, pool_size):
  B, Cin, H, W = x.shape
  x1 = _conv_bn_ref(x, p['w11'], p['bn11'], [(0, 0), (0, 0)], relu=True)
  x2 = _conv_bn_ref(x, p['w12'], p['bn12'], [(0, 0), (0, 0)], relu=True)
  x2_1 = _conv_bn_ref(x1, p['w20'], p['bn20'], [(1, 1), (1, 1)])
  x2_2 = _upsample_bilinear_ref(
      _conv_bn_ref(_adaptive_avg_pool_ref(x1, pool_size[0], pool_size[0]),
                   p['w21'], p['bn21'], [(1, 1), (1, 1)]), H, W)
  x2_3 = _upsample_bilinear_ref(
      _conv_bn_ref(_adaptive_avg_pool_ref(x1, pool_size[1], pool_size[1]),
                   p['w22'], p['bn22'], [(1, 1), (1, 1)]), H, W)
  x2_4 = _upsample_bilinear_ref(
      _conv_bn_ref(_adaptive_avg_pool_ref(x2, 1, W),
                   p['w23'], p['bn23'], [(0, 0), (1, 1)]), H, W)
  x2_5 = _upsample_bilinear_ref(
      _conv_bn_ref(_adaptive_avg_pool_ref(x2, H, 1),
                   p['w24'], p['bn24'], [(1, 1), (0, 0)]), H, W)
  y1 = _conv_bn_ref(jnp.maximum(x2_1 + x2_2 + x2_3, 0.0),
                    p['w25'], p['bn25'], [(1, 1), (1, 1)], relu=True)
  y2 = _conv_bn_ref(jnp.maximum(x2_5 + x2_4, 0.0),
                    p['w26'], p['bn26'], [(1, 1), (1, 1)], relu=True)
  out = _conv_bn_ref(jnp.concatenate([y1, y2], axis=1),
                     p['w3'], p['bn3'], [(0, 0), (0, 0)])
  return jnp.maximum(x + out, 0.0)


# ----------------------------------------------------------------------------
if __name__ == "__main__":
  key = jax.random.PRNGKey(0)
  kx, kp = jax.random.split(key)

  B, Cin, H, W = 2, 16, 16, 16          # inter_channels = Cin // 4 = 4
  pool_size = (3, 5)                    # scaled-down analogue of SPNet's (20, 12)

  x = jax.random.normal(kx, (B, Cin, H, W), jnp.float32)
  params = make_params(kp, Cin)
  folded = fold_params(params)
  consts = make_constants(H, W, pool_size)

  _roll_matches_jnp()                   # resolve the roll-convention probe eagerly
  fwd = jax.jit(strip_pooling_forward)

  y = jax.block_until_ready(fwd(x, folded, consts))
  y_ref = jax.block_until_ready(strip_pooling_reference(x, params, pool_size))

  assert y.shape == (B, Cin, H, W)
  max_err = float(jnp.max(jnp.abs(y - y_ref)))
  assert jnp.allclose(y, y_ref, atol=1e-3, rtol=1e-3), (
      f"mismatch vs reference, max abs err={max_err}")
  print("KERNEL_OK")
</pallas_src>

<mosaic_0001>
module attributes {stable_mosaic.version = 11 : i64} {
  func.func @k(%arg0: memref<8x128xf32, #tpu.memory_space<vmem>>, %arg1: memref<8x128xf32, #tpu.memory_space<vmem>>) attributes {dimension_semantics = [], scalar_prefetch = 0 : i64, scratch_operands = 0 : i64, tpu.core_type = #tpu.core_type<tc>} {
    %c0 = arith.constant 0 : index
    %c0_0 = arith.constant 0 : index
    %0 = vector.load %arg0[%c0, %c0_0] : memref<8x128xf32, #tpu.memory_space<vmem>>, vector<8x128xf32>
    %c1_i32 = arith.constant 1 : i32
    %1 = tpu.dynamic_rotate %0 by %c1_i32 dim 1 : vector<8x128xf32>, i32 -> vector<8x128xf32>
    %c0_1 = arith.constant 0 : index
    %c0_2 = arith.constant 0 : index
    %2 = vector.load %arg1[%c0_1, %c0_2] : memref<8x128xf32, #tpu.memory_space<vmem>>, vector<8x128xf32>
    tpu.vector_store %arg1[%c0_1, %c0_2], %1 {strides = array<i32>} : memref<8x128xf32, #tpu.memory_space<vmem>>, vector<8x128xf32>,
    return
  }
}

</mosaic_0001>

<llo_original>
// kernel: tpu_custom_call.1
$region0: #{tpu_custom_call.1}
  #allocation0 [shape = 'u32[]', space=smem, size = 0x4, offset = 0x4, fixed_abs, tag = 'smem constant byte address 0x4 - core index']
  #allocation1 [shape = 'u32[72,128]{1,0:T(1,128)}', space=vmem, size = 0x9000, scoped, tag = 'internal scratch']
  %s0 = inlined_call_operand.hbm [shape: f32[8,128], index: 0, kind: input, shape index: {}]
  %s1 = inlined_call_operand.hbm [shape: f32[8,128], index: 1, kind: output, shape index: {}]
  %s2 = sld [smem:[#allocation0]]
  $region18: #{tpu_custom_call.1} parent=0
    _
  %s4 = ssub.s32 1, %s2
  %s5 = scalar_select 0, %s4, %s2
  $region1: #{tpu_custom_call.1} parent=0
    #allocation2 [shape = 'u8[4096]{0}', space=vmem, size = 0x1000, scoped, tag = 'input window, operand 0, single buffered']
    #allocation3 [shape = 's32[1]{0}', space=sflag, size = 0x4, scoped, tag = 'scoped memory for tpu_custom_call.1']
    #allocation4 [shape = 's32[1]{0}', space=sflag, size = 0x4, scoped, tag = 'scoped memory for tpu_custom_call.1']
    #allocation5 [shape = 'u8[4096]{0}', space=vmem, size = 0x1000, scoped, tag = 'output window, operand 0, single buffered']
    %6 = vsyncpa [#allocation3], 0
    %7 = vsyncpa [#allocation4], 0
    // Predicated region
    $region2: #{tpu_custom_call.1} parent=1 // pred_check
      _
    $region3: #{tpu_custom_call.1} parent=1 // pred_check_branch
      %9 = sbr.rel (0) target = $region5
    $region4: #{tpu_custom_call.1} parent=1 // pred_region
      %11 = vsyncadd [#allocation3], 0
      %s13 = sshll.u32 %s0, 4
      %s14 = int_to_ptr.hbm [resolvable:$true] %s13
      %s15 = sshll.u32 [#allocation2], 4
      %s16 = int_to_ptr.vmem [resolvable:$true] %s15
      %18 = dma.hbm_to_vmem [thread:$0]  %s14, 128, %s16, [#allocation3]
    $region5: #{tpu_custom_call.1} parent=1 // pred_fallthru
      _
    // Predicated region
    $region6: #{tpu_custom_call.1} parent=1 // pred_check
      _
    $region7: #{tpu_custom_call.1} parent=1 // pred_check_branch
      %20 = sbr.rel (0) target = $region9
    $region8: #{tpu_custom_call.1} parent=1 // pred_region
      %22 = dma.done [#allocation3], 128
    $region9: #{tpu_custom_call.1} parent=1 // pred_fallthru
      _
    %v23 = vld [vmem:[#allocation2] sm:$0xff]
    %24 = vrot.lane.b32.xlu0 %v23, 1
    %v25 = vpop.permute.xlu0 %24
    %26 = vst [vmem:[#allocation5] sm:$0xff] %v25
    // Predicated region
    $region10: #{tpu_custom_call.1} parent=1 // pred_check
      _
    $region11: #{tpu_custom_call.1} parent=1 // pred_check_branch
      %28 = sbr.rel (0) target = $region13
    $region12: #{tpu_custom_call.1} parent=1 // pred_region
      %30 = vsyncadd [#allocation4], 0
      %s32 = sshll.u32 [#allocation5], 4
      %s33 = int_to_ptr.vmem [resolvable:$true] %s32
      %s34 = sshll.u32 %s1, 4
      %s35 = int_to_ptr.hbm [resolvable:$true] %s34
      %37 = dma.vmem_to_hbm [thread:$0]  %s33, 128, %s35, [#allocation4]
    $region13: #{tpu_custom_call.1} parent=1 // pred_fallthru
      _
    // Predicated region
    $region14: #{tpu_custom_call.1} parent=1 // pred_check
      _
    $region15: #{tpu_custom_call.1} parent=1 // pred_check_branch
      %39 = sbr.rel (0) target = $region17
    $region16: #{tpu_custom_call.1} parent=1 // pred_region
      %41 = dma.done [#allocation4], 128
    $region17: #{tpu_custom_call.1} parent=1 // pred_fallthru
      _
    %42 = vsyncpa [#allocation3], 1
    %43 = vsyncpa [#allocation4], 1

</llo_original>
